<compile_context>
chip_gen: v7x
topology: tpu7x:2x2x1
jax: 0.10.0
libtpu: 0.0.40
codegen_flags: <defaults>
</compile_context>

<pallas_src>
import functools
import math

import jax
import jax.numpy as jnp
from jax import lax
from jax.experimental import pallas as pl
from jax.experimental.pallas import tpu as pltpu

NEG_INF = -1e30                       # plain Python float -> jaxpr literal
LANE = 128                            # lane width; H is padded to a multiple
VMEM_LIMIT = 48 * 1024 * 1024         # leaves headroom inside v7x's 64 MiB


def _pad_to(x, shape):
    return jnp.pad(x, [(0, t - s) for s, t in zip(x.shape, shape)])


# ----------------------------------------------------------------------------
# Kernel 1: GlobalGNN step  h' = relu(A @ (h W^T) + b), tiled with K-reduction
# (h W^T is pre-projected in the wrapper; A and hp arrive in bf16)
# ----------------------------------------------------------------------------
def _global_gnn_step_kernel(a_ref, hp_ref, b_ref, o_ref, acc_ref):
    k = pl.program_id(1)

    @pl.when(k == 0)
    def _():
        acc_ref[...] = jnp.zeros_like(acc_ref)

    acc_ref[...] += jnp.dot(a_ref[...], hp_ref[...],
                            preferred_element_type=jnp.float32)

    @pl.when(k == pl.num_programs(1) - 1)
    def _():
        o_ref[...] = jnp.maximum(acc_ref[...] + b_ref[...], 0.0)


def global_gnn_step(A_bf16, hp_bf16, bg, tm, tk):
    Npad, Hp = hp_bf16.shape
    grid = (Npad // tm, Npad // tk)
    return pl.pallas_call(
        _global_gnn_step_kernel,
        out_shape=jax.ShapeDtypeStruct((Npad, Hp), jnp.float32),
        grid=grid,
        in_specs=[
            pl.BlockSpec((tm, tk), lambda i, k: (i, k)),
            pl.BlockSpec((tk, Hp), lambda i, k: (k, 0)),
            pl.BlockSpec((1, Hp), lambda i, k: (0, 0)),
        ],
        out_specs=pl.BlockSpec((tm, Hp), lambda i, k: (i, 0)),
        scratch_shapes=[pltpu.VMEM((tm, Hp), jnp.float32)],
        compiler_params=pltpu.CompilerParams(
            dimension_semantics=("parallel", "arbitrary"),
            vmem_limit_bytes=VMEM_LIMIT),
        # TODO(synk): on v7x the A stream could additionally be cast to fp8
        # (MXU-native there) if the normalized adjacency tolerates the range.
    )(A_bf16, hp_bf16, bg)


# ----------------------------------------------------------------------------
# Kernel 2: SessionGNN (GRU) cell, bt sessions per grid step, fused matmuls
# ----------------------------------------------------------------------------
def _session_gnn_cell_kernel(a_ref, h_ref, we_ref, be_ref, wih_ref, bih_ref,
                             whh_ref, bhh_ref, o_ref):
    BT, L, Hp = h_ref.shape
    A = a_ref[...]                                    # (BT, L, L) bf16
    hb = h_ref[...]                                   # (BT, L, Hp) bf16
    hflat = hb.reshape(BT * L, Hp)

    # fused edge-in / edge-out projection: single (Hp, 2Hp) matmul
    edge = (jnp.dot(hflat, we_ref[...], preferred_element_type=jnp.float32)
            + be_ref[...]).reshape(BT, L, 2 * Hp).astype(jnp.bfloat16)
    # single batched propagation over the session graph with an (L, 2Hp) rhs
    inputs = jnp.einsum('bij,bjh->bih', A, edge,
                        preferred_element_type=jnp.float32)
    inputs = inputs.reshape(BT * L, 2 * Hp).astype(jnp.bfloat16)

    # fused GRU gates: one (2Hp,3Hp) and one (Hp,3Hp) matmul;
    # the 3Hp slices are lane-aligned because Hp % 128 == 0.
    gi = (jnp.dot(inputs, wih_ref[...], preferred_element_type=jnp.float32)
          + bih_ref[...])
    gh = (jnp.dot(hflat, whh_ref[...], preferred_element_type=jnp.float32)
          + bhh_ref[...])
    i_r, i_i, i_n = gi[:, :Hp], gi[:, Hp:2 * Hp], gi[:, 2 * Hp:]
    h_r, h_i, h_n = gh[:, :Hp], gh[:, Hp:2 * Hp], gh[:, 2 * Hp:]
    resetgate = jax.nn.sigmoid(i_r + h_r)
    inputgate = jax.nn.sigmoid(i_i + h_i)
    newgate = jnp.tanh(i_n + resetgate * h_n)
    hf = hflat.astype(jnp.float32)
    hy = newgate + inputgate * (hf - newgate)
    o_ref[...] = hy.reshape(BT, L, Hp)


def _prep_session_weights(params, H, Hp):
    bf = jnp.bfloat16
    pad_m = lambda w: _pad_to(w, (Hp, Hp))
    pad_v = lambda v: _pad_to(v, (Hp,))
    we = jnp.concatenate([pad_m(params['sess_w_ein']).T,
                          pad_m(params['sess_w_eout']).T], axis=1).astype(bf)
    be = jnp.concatenate([pad_v(params['sess_b_ein']),
                          pad_v(params['sess_b_eout'])]).reshape(1, 2 * Hp)
    w_ih, w_hh = params['sess_w_ih'], params['sess_w_hh']
    b_ih, b_hh = params['sess_b_ih'], params['sess_b_hh']
    wih_p = jnp.zeros((3 * Hp, 2 * Hp), jnp.float32)
    whh_p = jnp.zeros((3 * Hp, Hp), jnp.float32)
    bih_p = jnp.zeros((3 * Hp,), jnp.float32)
    bhh_p = jnp.zeros((3 * Hp,), jnp.float32)
    for g in range(3):                      # per-gate blocks at padded offsets
        wih_p = wih_p.at[g * Hp:g * Hp + H, :H].set(w_ih[g * H:(g + 1) * H, :H])
        wih_p = wih_p.at[g * Hp:g * Hp + H, Hp:Hp + H].set(w_ih[g * H:(g + 1) * H, H:])
        whh_p = whh_p.at[g * Hp:g * Hp + H, :H].set(w_hh[g * H:(g + 1) * H, :])
        bih_p = bih_p.at[g * Hp:g * Hp + H].set(b_ih[g * H:(g + 1) * H])
        bhh_p = bhh_p.at[g * Hp:g * Hp + H].set(b_hh[g * H:(g + 1) * H])
    return (we, be, wih_p.T.astype(bf), bih_p.reshape(1, 3 * Hp),
            whh_p.T.astype(bf), bhh_p.reshape(1, 3 * Hp))


def session_gnn_cell(A_bf, hid_bf, weights, bt):
    we, be, wih_t, bih, whh_t, bhh = weights
    Bp, L, Hp = hid_bf.shape
    grid = (Bp // bt,)
    return pl.pallas_call(
        _session_gnn_cell_kernel,
        out_shape=jax.ShapeDtypeStruct((Bp, L, Hp), jnp.float32),
        grid=grid,
        in_specs=[
            pl.BlockSpec((bt, L, L), lambda b: (b, 0, 0)),
            pl.BlockSpec((bt, L, Hp), lambda b: (b, 0, 0)),
            pl.BlockSpec((Hp, 2 * Hp), lambda b: (0, 0)),
            pl.BlockSpec((1, 2 * Hp), lambda b: (0, 0)),
            pl.BlockSpec((2 * Hp, 3 * Hp), lambda b: (0, 0)),
            pl.BlockSpec((1, 3 * Hp), lambda b: (0, 0)),
            pl.BlockSpec((Hp, 3 * Hp), lambda b: (0, 0)),
            pl.BlockSpec((1, 3 * Hp), lambda b: (0, 0)),
        ],
        out_specs=pl.BlockSpec((bt, L, Hp), lambda b: (b, 0, 0)),
        compiler_params=pltpu.CompilerParams(dimension_semantics=("parallel",)),
    )(A_bf, hid_bf, we, be, wih_t, bih, whh_t, bhh)


# ----------------------------------------------------------------------------
# Kernel 3: multi-head attention, single query, bt sessions per grid step.
# Per-head scores via a block-diagonal (Hp,Hp) head-sum matrix, full-width
# softmax (no per-head lane slicing), fused K/V projection.
# ----------------------------------------------------------------------------
def _mha_kernel(scale, q_ref, kv_ref, mask_ref, wq_ref, bq_ref, wkv_ref,
                bkv_ref, wo_ref, bo_ref, hm_ref, o_ref):
    BT, L, Hp = kv_ref.shape
    qb = q_ref[...]                                   # (BT, Hp) bf16
    kvf = kv_ref[...].reshape(BT * L, Hp)             # bf16

    q = (jnp.dot(qb, wq_ref[...], preferred_element_type=jnp.float32)
         + bq_ref[...]) * scale                       # (BT, Hp) f32
    kvp = (jnp.dot(kvf, wkv_ref[...], preferred_element_type=jnp.float32)
           + bkv_ref[...]).reshape(BT, L, 2 * Hp)
    k = kvp[:, :, :Hp]
    v = kvp[:, :, Hp:]

    p = (q[:, None, :] * k).astype(jnp.bfloat16)      # (BT, L, Hp)
    s = jnp.dot(p.reshape(BT * L, Hp), hm_ref[...],
                preferred_element_type=jnp.float32).reshape(BT, L, Hp)

    pad = (mask_ref[...] == 0)[:, :, None]            # (BT, L, 1)
    s = jnp.where(pad, NEG_INF, s)
    m = jnp.max(s, axis=1, keepdims=True)
    e = jnp.exp(s - m)
    denom = jnp.sum(e, axis=1, keepdims=True)
    w = e * pl.reciprocal(denom, approx=True)         # (BT, L, Hp)
    ctx = jnp.sum(w * v, axis=1)                      # (BT, Hp)
    o_ref[...] = (jnp.dot(ctx.astype(jnp.bfloat16), wo_ref[...],
                          preferred_element_type=jnp.float32) + bo_ref[...])


def _prep_mha_weights(params, H, Hp, n_heads):
    bf = jnp.bfloat16
    pad_m = lambda w: _pad_to(w, (Hp, Hp))
    pad_v = lambda v: _pad_to(v, (Hp,))
    in_w = params['mha_in_proj_weight']               # (3H, H)
    in_b = params['mha_in_proj_bias']                 # (3H,)
    wq_t = pad_m(in_w[:H]).T.astype(bf)
    wkv_t = jnp.concatenate([pad_m(in_w[H:2 * H]).T,
                             pad_m(in_w[2 * H:]).T], axis=1).astype(bf)
    bq = pad_v(in_b[:H]).reshape(1, Hp)
    bkv = jnp.concatenate([pad_v(in_b[H:2 * H]),
                           pad_v(in_b[2 * H:])]).reshape(1, 2 * Hp)
    wo_t = pad_m(params['mha_out_proj_weight']).T.astype(bf)
    bo = pad_v(params['mha_out_proj_bias']).reshape(1, Hp)
    head_dim = H // n_heads
    ids = jnp.arange(Hp, dtype=jnp.int32)
    hid = jnp.where(ids < H, ids // head_dim, -1)     # padded lanes -> no head
    M = ((hid[:, None] == hid[None, :]) & (hid[:, None] >= 0)).astype(bf)
    return wq_t, bq, wkv_t, bkv, wo_t, bo, M


def mha_single_query(q_bf, kv_bf, items, weights, head_dim, bt):
    wq_t, bq, wkv_t, bkv, wo_t, bo, M = weights
    Bp, L, Hp = kv_bf.shape
    kern = functools.partial(_mha_kernel, float(1.0 / math.sqrt(head_dim)))
    grid = (Bp // bt,)
    return pl.pallas_call(
        kern,
        out_shape=jax.ShapeDtypeStruct((Bp, Hp), jnp.float32),
        grid=grid,
        in_specs=[
            pl.BlockSpec((bt, Hp), lambda b: (b, 0)),
            pl.BlockSpec((bt, L, Hp), lambda b: (b, 0, 0)),
            pl.BlockSpec((bt, L), lambda b: (b, 0)),
            pl.BlockSpec((Hp, Hp), lambda b: (0, 0)),
            pl.BlockSpec((1, Hp), lambda b: (0, 0)),
            pl.BlockSpec((Hp, 2 * Hp), lambda b: (0, 0)),
            pl.BlockSpec((1, 2 * Hp), lambda b: (0, 0)),
            pl.BlockSpec((Hp, Hp), lambda b: (0, 0)),
            pl.BlockSpec((1, Hp), lambda b: (0, 0)),
            pl.BlockSpec((Hp, Hp), lambda b: (0, 0)),
        ],
        out_specs=pl.BlockSpec((bt, Hp), lambda b: (b, 0)),
        compiler_params=pltpu.CompilerParams(dimension_semantics=("parallel",)),
    )(q_bf, kv_bf, items.astype(jnp.int32), wq_t, bq, wkv_t, bkv, wo_t, bo, M)


# ----------------------------------------------------------------------------
# Kernel 4: target attention + combine + scoring, re-associated so no
# (bt, ct, H) intermediate exists.  Candidate- and batch-only projections
# (wtc, candA, bias_vec) are hoisted to the wrapper.  Lane-dense (bt,ct) out.
#   score[b,c] = sum_l att[b,l,c] * (fse @ candA^T)[b,l,c] + bias_vec[b]·cand[c]
# ----------------------------------------------------------------------------
def _target_score_kernel(fse_ref, mask_ref, wtc_ref, candA_ref, bias_ref,
                         cand_ref, o_ref):
    BT, L, Hp = fse_ref.shape
    CT = wtc_ref.shape[0]
    fse_flat = fse_ref[...].reshape(BT * L, Hp)                       # bf16

    scores = lax.dot_general(fse_flat, wtc_ref[...],
                             (((1,), (1,)), ((), ())),
                             preferred_element_type=jnp.float32
                             ).reshape(BT, L, CT)
    pad = (mask_ref[...] == 0)[:, :, None]
    scores = jnp.where(pad, NEG_INF, scores)
    m = jnp.max(scores, axis=1, keepdims=True)
    e = jnp.exp(scores - m)
    denom = jnp.sum(e, axis=1, keepdims=True)
    att = e * pl.reciprocal(denom, approx=True)                       # (BT,L,CT)

    G = lax.dot_general(fse_flat, candA_ref[...],
                        (((1,), (1,)), ((), ())),
                        preferred_element_type=jnp.float32).reshape(BT, L, CT)
    term1 = jnp.sum(att * G, axis=1)                                  # (BT, CT)
    bias = lax.dot_general(bias_ref[...], cand_ref[...],
                           (((1,), (1,)), ((), ())),
                           preferred_element_type=jnp.float32)        # (BT, CT)
    o_ref[...] = term1 + bias


def target_score(fse_bf, items, wtc, candA, bias_vec, cand_bf, bt, ct):
    Bp, L, Hp = fse_bf.shape
    Cpad = wtc.shape[0]
    grid = (Bp // bt, Cpad // ct)
    return pl.pallas_call(
        _target_score_kernel,
        out_shape=jax.ShapeDtypeStruct((Bp, Cpad), jnp.float32),
        grid=grid,
        in_specs=[
            pl.BlockSpec((bt, L, Hp), lambda b, c: (b, 0, 0)),
            pl.BlockSpec((bt, L), lambda b, c: (b, 0)),
            pl.BlockSpec((ct, Hp), lambda b, c: (c, 0)),
            pl.BlockSpec((ct, Hp), lambda b, c: (c, 0)),
            pl.BlockSpec((bt, Hp), lambda b, c: (b, 0)),
            pl.BlockSpec((ct, Hp), lambda b, c: (c, 0)),
        ],
        out_specs=pl.BlockSpec((bt, ct), lambda b, c: (b, c)),
        compiler_params=pltpu.CompilerParams(
            dimension_semantics=("parallel", "parallel"),
            vmem_limit_bytes=VMEM_LIMIT),
    )(fse_bf, items.astype(jnp.int32), wtc, candA, bias_vec, cand_bf)


# ----------------------------------------------------------------------------
# Full forward pass (plain-JAX glue: padding, gathers, tiny projections)
# ----------------------------------------------------------------------------
def gce_tagnn_v2_forward(params, session_items, session_len, session_adj,
                         global_adj, gnn_step=1, n_heads=2):
    bf = jnp.bfloat16
    emb = params['embedding']                          # (N, H)
    N, H = emb.shape
    B, L = session_items.shape
    assert H % n_heads == 0, "hidden_size must be divisible by n_heads"

    Hp = LANE * pl.cdiv(H, LANE)                       # lane-pad hidden dim

    # ---- batch tile / padding (kernels 2/3/4 run at Bpad) ----
    bt = min(64, 8 * pl.cdiv(B, 8))
    Bpad = pl.cdiv(B, bt) * bt
    if Bpad != B:
        pb = Bpad - B
        session_items = jnp.pad(session_items, ((0, pb), (0, 0)))
        session_len = jnp.pad(session_len, (0, pb), constant_values=1)
        session_adj = jnp.pad(session_adj, ((0, pb), (0, 0), (0, 0)))

    emb_p = _pad_to(emb, (N, Hp))
    pos_table = _pad_to(params['position_embedding'],
                        (params['position_embedding'].shape[0], Hp))

    # ---- GlobalGNN over the item table (dense A, tiled K-reduction) ----
    if N <= 512:
        Npad = 128 * pl.cdiv(N, 128)
        tm = tk = Npad
    else:
        tm = tk = 512
        Npad = 512 * pl.cdiv(N, 512)
    A_pad = jnp.pad(global_adj, ((0, Npad - N), (0, Npad - N))).astype(bf)
    wg_p = _pad_to(params['global_w'], (Hp, Hp))
    bg = _pad_to(params['global_b'], (Hp,)).reshape(1, Hp)
    h_g = _pad_to(emb_p, (Npad, Hp))
    for _ in range(gnn_step):
        # relu((A h) W^T + b) == relu(A (h W^T) + b): the tiny (N,H)x(H,H)
        # projection happens here; the N^2-sized A@(.) runs in the kernel.
        hp = (h_g @ wg_p.T).astype(bf)
        h_g = global_gnn_step(A_pad, hp, bg, tm, tk)
    session_global = jnp.take(h_g, session_items, axis=0)     # (Bpad, L, Hp)

    # ---- SessionGNN on per-session graphs ----
    # TODO(synk): the two jnp.take gathers could move into the kernel via a
    # PrefetchScalarGridSpec row-gather to skip the HBM round trip.
    sess_w = _prep_session_weights(params, H, Hp)
    session_local = jnp.take(emb_p, session_items, axis=0)    # (Bpad, L, Hp)
    A_s_bf = session_adj.astype(bf)
    for _ in range(gnn_step):
        session_local = session_gnn_cell(A_s_bf, session_local.astype(bf),
                                         sess_w, bt)

    rich = session_global + session_local                     # dropout: eval id

    # ---- reversed position embeddings (clamped into table range) ----
    positions = jnp.arange(L, dtype=jnp.int32)[None, :]
    rev_pos = session_len[:, None] - 1 - positions
    rev_pos = jnp.where(session_items == 0, 0, rev_pos)
    rev_pos = jnp.clip(rev_pos, 0, pos_table.shape[0] - 1)
    fse = rich + jnp.take(pos_table, rev_pos, axis=0)         # (Bpad, L, Hp)

    # ---- last item embedding (s_local) ----
    last_idx = session_len - 1
    last_item = fse[jnp.arange(Bpad), last_idx]               # (Bpad, Hp)
    s_local = last_item

    # ---- multi-head attention with the last item as query (s_global) ----
    fse_bf = fse.astype(bf)
    mha_w = _prep_mha_weights(params, H, Hp, n_heads)
    s_global = mha_single_query(last_item.astype(bf), fse_bf, session_items,
                                mha_w, H // n_heads, bt)      # (Bpad, Hp)

    # ---- candidate / session projections hoisted out of the score kernel ----
    C = N - 1
    ct = 512 if C > 512 else 128 * pl.cdiv(C, 128)            # keep ct <= 512 (v7x)
    Cpad = ct * pl.cdiv(C, ct)
    cand = _pad_to(emb_p[1:], (Cpad, Hp))
    w3 = params['w_3']                                        # (H, 3H)
    wt_p = _pad_to(params['w_target'], (Hp, Hp))
    w3a = _pad_to(w3[:, :H], (Hp, Hp))
    w3b = _pad_to(w3[:, H:2 * H], (Hp, Hp))
    w3c = _pad_to(w3[:, 2 * H:], (Hp, Hp))
    wtc = (cand @ wt_p.T).astype(bf)                          # (Cpad, Hp)
    candA = (cand @ w3a).astype(bf)                           # (Cpad, Hp)
    bias_vec = (s_local @ w3b.T + s_global @ w3c.T).astype(bf)  # (Bpad, Hp)

    scores = target_score(fse_bf, session_items, wtc, candA, bias_vec,
                          cand.astype(bf), bt, ct)            # (Bpad, Cpad)
    return scores[:B, :C]


# ----------------------------------------------------------------------------
# Deterministic parameter initialization (synthetic; xavier-uniform on 2D)
# ----------------------------------------------------------------------------
def xavier_uniform(key, shape):
    fan_out, fan_in = shape[0], shape[1]
    a = math.sqrt(6.0 / (fan_in + fan_out))
    return jax.random.uniform(key, shape, jnp.float32, -a, a)


def init_params(key, num_items, hidden_size):
    H = hidden_size
    keys = jax.random.split(key, 12)
    return {
        'embedding': xavier_uniform(keys[0], (num_items, H)),
        'position_embedding': xavier_uniform(keys[1], (200, H)),
        'global_w': xavier_uniform(keys[2], (H, H)),
        'global_b': jnp.zeros((H,), jnp.float32),
        'sess_w_ih': xavier_uniform(keys[3], (3 * H, 2 * H)),
        'sess_w_hh': xavier_uniform(keys[4], (3 * H, H)),
        'sess_b_ih': jnp.zeros((3 * H,), jnp.float32),
        'sess_b_hh': jnp.zeros((3 * H,), jnp.float32),
        'sess_w_ein': xavier_uniform(keys[5], (H, H)),
        'sess_b_ein': jnp.zeros((H,), jnp.float32),
        'sess_w_eout': xavier_uniform(keys[6], (H, H)),
        'sess_b_eout': jnp.zeros((H,), jnp.float32),
        'mha_in_proj_weight': xavier_uniform(keys[7], (3 * H, H)),
        'mha_in_proj_bias': jnp.zeros((3 * H,), jnp.float32),
        'mha_out_proj_weight': xavier_uniform(keys[8], (H, H)),
        'mha_out_proj_bias': jnp.zeros((H,), jnp.float32),
        'w_target': xavier_uniform(keys[9], (H, H)),
        'w_3': xavier_uniform(keys[10], (H, 3 * H)),
    }


if __name__ == "__main__":
    num_items, hidden_size, gnn_step, n_heads = 65, 32, 1, 2
    B, L = 2, 8

    key = jax.random.PRNGKey(0)
    pkey, k1, k2 = jax.random.split(key, 3)
    params = init_params(pkey, num_items, hidden_size)

    session_items = jnp.array([[3, 7, 12, 5, 0, 0, 0, 0],
                               [9, 2, 14, 21, 6, 11, 0, 0]], dtype=jnp.int32)
    session_len = jnp.array([4, 6], dtype=jnp.int32)
    session_adj = jax.random.uniform(k1, (B, L, L), jnp.float32)
    global_adj = jax.random.uniform(k2, (num_items, num_items), jnp.float32) / num_items

    scores = gce_tagnn_v2_forward(params, session_items, session_len,
                                  session_adj, global_adj,
                                  gnn_step=gnn_step, n_heads=n_heads)
    scores = jax.block_until_ready(scores)
    assert scores.shape == (B, num_items - 1), scores.shape
    assert bool(jnp.all(jnp.isfinite(scores)))
    print("KERNEL_OK")
</pallas_src>

<mosaic_0001>
module attributes {stable_mosaic.version = 11 : i64} {
  func.func @_global_gnn_step_kernel(%arg0: i32, %arg1: i32, %arg2: memref<128x128xbf16, #tpu.memory_space<vmem>>, %arg3: memref<128x128xbf16, #tpu.memory_space<vmem>>, %arg4: memref<1x128xf32, #tpu.memory_space<vmem>>, %arg5: memref<128x128xf32, #tpu.memory_space<vmem>>, %arg6: memref<128x128xf32, #tpu.memory_space<vmem>>) attributes {dimension_semantics = [#tpu.dimension_semantics<parallel>, #tpu.dimension_semantics<arbitrary>], iteration_bounds = array<i64: 1, 1>, scalar_prefetch = 0 : i64, scratch_operands = 1 : i64, tpu.core_type = #tpu.core_type<tc>, window_params = [{transform_indices = @transform_0, window_bounds = array<i64: 128, 128>}, {transform_indices = @transform_1, window_bounds = array<i64: 128, 128>}, {pipeline_mode = #tpu.pipeline_mode<synchronous>, transform_indices = @transform_2, window_bounds = array<i64: 1, 128>}, {transform_indices = @transform_3, window_bounds = array<i64: 128, 128>}]} {
    %c0_i32 = arith.constant 0 : i32
    %0 = arith.cmpi eq, %arg1, %c0_i32 : i32
    %1 = arith.extui %0 : i1 to i32
    %c0_i32_0 = arith.constant 0 : i32
    %2 = arith.cmpi ne, %1, %c0_i32_0 : i32
    scf.if %2 {
      %cst_10 = arith.constant 0.000000e+00 : f32
      %12 = vector.broadcast %cst_10 : f32 to vector<128x128xf32>
      %c0_11 = arith.constant 0 : index
      %c0_12 = arith.constant 0 : index
      %13 = vector.load %arg6[%c0_11, %c0_12] : memref<128x128xf32, #tpu.memory_space<vmem>>, vector<128x128xf32>
      tpu.vector_store %arg6[%c0_11, %c0_12], %12 {strides = array<i32>} : memref<128x128xf32, #tpu.memory_space<vmem>>, vector<128x128xf32>,
    } else {
    }
    %c0 = arith.constant 0 : index
    %c0_1 = arith.constant 0 : index
    %3 = vector.load %arg6[%c0, %c0_1] : memref<128x128xf32, #tpu.memory_space<vmem>>, vector<128x128xf32>
    %c0_2 = arith.constant 0 : index
    %c0_3 = arith.constant 0 : index
    %4 = vector.load %arg2[%c0_2, %c0_3] : memref<128x128xbf16, #tpu.memory_space<vmem>>, vector<128x128xbf16>
    %c0_4 = arith.constant 0 : index
    %c0_5 = arith.constant 0 : index
    %5 = vector.load %arg3[%c0_4, %c0_5] : memref<128x128xbf16, #tpu.memory_space<vmem>>, vector<128x128xbf16>
    %cst = arith.constant dense<0.000000e+00> : vector<128x128xf32>
    %6 = tpu.matmul %4, %5, %cst {dimension_numbers = #tpu.dot_dimension_numbers<[1], [0], [0], [1], [0, 0, 1, 1], [], []>} : vector<128x128xbf16>, vector<128x128xbf16>, vector<128x128xf32> -> vector<128x128xf32>
    %7 = arith.addf %3, %6 : vector<128x128xf32>
    %c0_6 = arith.constant 0 : index
    %c0_7 = arith.constant 0 : index
    %8 = vector.load %arg6[%c0_6, %c0_7] : memref<128x128xf32, #tpu.memory_space<vmem>>, vector<128x128xf32>
    tpu.vector_store %arg6[%c0_6, %c0_7], %7 {strides = array<i32>} : memref<128x128xf32, #tpu.memory_space<vmem>>, vector<128x128xf32>,
    %c0_i32_8 = arith.constant 0 : i32
    %9 = arith.cmpi eq, %arg1, %c0_i32_8 : i32
    %10 = arith.extui %9 : i1 to i32
    %c0_i32_9 = arith.constant 0 : i32
    %11 = arith.cmpi ne, %10, %c0_i32_9 : i32
    scf.if %11 {
      %c0_10 = arith.constant 0 : index
      %c0_11 = arith.constant 0 : index
      %12 = vector.load %arg6[%c0_10, %c0_11] : memref<128x128xf32, #tpu.memory_space<vmem>>, vector<128x128xf32>
      %c0_12 = arith.constant 0 : index
      %c0_13 = arith.constant 0 : index
      %13 = vector.load %arg4[%c0_12, %c0_13] : memref<1x128xf32, #tpu.memory_space<vmem>>, vector<1x128xf32>
      %14 = vector.broadcast %13 : vector<1x128xf32> to vector<128x128xf32>
      %15 = arith.addf %12, %14 : vector<128x128xf32>
      %cst_14 = arith.constant 0.000000e+00 : f32
      %16 = vector.broadcast %cst_14 : f32 to vector<128x128xf32>
      %17 = arith.maximumf %15, %16 : vector<128x128xf32>
      %c0_15 = arith.constant 0 : index
      %c0_16 = arith.constant 0 : index
      %18 = vector.load %arg5[%c0_15, %c0_16] : memref<128x128xf32, #tpu.memory_space<vmem>>, vector<128x128xf32>
      tpu.vector_store %arg5[%c0_15, %c0_16], %17 {strides = array<i32>} : memref<128x128xf32, #tpu.memory_space<vmem>>, vector<128x128xf32>,
    } else {
    }
    return
  }
  func.func @transform_0(%arg0: i32, %arg1: i32) -> (i32, i32) {
    %c0_i32 = arith.constant 0 : i32
    return %arg0, %arg1 : i32, i32
  }
  func.func @transform_1(%arg0: i32, %arg1: i32) -> (i32, i32) {
    %c0_i32 = arith.constant 0 : i32
    %c0_i32_0 = arith.constant 0 : i32
    return %arg1, %c0_i32 : i32, i32
  }
  func.func @transform_2(%arg0: i32, %arg1: i32) -> (i32, i32) {
    %c0_i32 = arith.constant 0 : i32
    %c0_i32_0 = arith.constant 0 : i32
    %c0_i32_1 = arith.constant 0 : i32
    return %c0_i32, %c0_i32_0 : i32, i32
  }
  func.func @transform_3(%arg0: i32, %arg1: i32) -> (i32, i32) {
    %c0_i32 = arith.constant 0 : i32
    %c0_i32_0 = arith.constant 0 : i32
    return %arg0, %c0_i32 : i32, i32
  }
}

</mosaic_0001>

<llo_original>
// kernel: tpu_custom_call.1
$region0: #{tpu_custom_call.1}
  #allocation0 [shape = 'u32[]', space=smem, size = 0x4, offset = 0x4, fixed_abs, tag = 'smem constant byte address 0x4 - core index']
  #allocation1 [shape = 'u32[144,128]{1,0:T(1,128)}', space=vmem, size = 0x12000, scoped, tag = 'internal scratch']
  #allocation2 [shape = 'f32[128,128]{1,0:T(8,128)}', space=vmem, size = 0x10000, scoped, tag = 'scratch operand']
  %s0 = inlined_call_operand.hbm [shape: bf16[128,128], index: 0, kind: input, shape index: {}]
  %s1 = inlined_call_operand.hbm [shape: bf16[128,128], index: 1, kind: input, shape index: {}]
  %s2 = inlined_call_operand.vmem [shape: f32[1,128], index: 2, kind: input, shape index: {}]
  %s3 = inlined_call_operand.hbm [shape: f32[128,128], index: 3, kind: output, shape index: {}]
  %s4 = sld [smem:[#allocation0]]
  $region38: #{tpu_custom_call.1} parent=0
    _
  %s6 = ssub.s32 1, %s4
  %s7 = scalar_select 0, %s6, %s4
  $region1: #{tpu_custom_call.1} parent=0
    #allocation3 [shape = 'u8[32768]{0}', space=vmem, size = 0x8000, scoped, tag = 'input window, operand 0, single buffered']
    #allocation4 [shape = 's32[1]{0}', space=sflag, size = 0x4, scoped, tag = 'scoped memory for tpu_custom_call.1']
    #allocation5 [shape = 's32[1]{0}', space=sflag, size = 0x4, scoped, tag = 'scoped memory for tpu_custom_call.1']
    #allocation6 [shape = 'u8[32768]{0}', space=vmem, size = 0x8000, scoped, tag = 'input window, operand 1, single buffered']
    #allocation7 [shape = 's32[1]{0}', space=sflag, size = 0x4, scoped, tag = 'scoped memory for tpu_custom_call.1']
    #allocation8 [shape = 'u8[65536]{0}', space=vmem, size = 0x10000, scoped, tag = 'output window, operand 0, single buffered']
    %8 = vsyncpa [#allocation4], 0
    %9 = vsyncpa [#allocation7], 0
    %10 = vsyncpa [#allocation5], 0
    // Predicated region
    $region2: #{tpu_custom_call.1} parent=1 // pred_check
      _
    $region3: #{tpu_custom_call.1} parent=1 // pred_check_branch
      %12 = sbr.rel (0) target = $region5
    $region4: #{tpu_custom_call.1} parent=1 // pred_region
      %s14 = ssub.s32 1024, 1024
      %15 = vsyncadd [#allocation4], %s14
      %s16 = sshll.u32 [#allocation3], 4
      %s17 = int_to_ptr.vmem [resolvable:$true] %s16
      %22 = dma.hbm_to_vmem [thread:$0]  %s0, 1024, %s17, [#allocation4], 64, 64, 4
    $region5: #{tpu_custom_call.1} parent=1 // pred_fallthru
      _
    // Predicated region
    $region6: #{tpu_custom_call.1} parent=1 // pred_check
      _
    $region7: #{tpu_custom_call.1} parent=1 // pred_check_branch
      %24 = sbr.rel (0) target = $region9
    $region8: #{tpu_custom_call.1} parent=1 // pred_region
      %s26 = ssub.s32 1024, 1024
      %27 = vsyncadd [#allocation7], %s26
      %s28 = sshll.u32 [#allocation6], 4
      %s29 = int_to_ptr.vmem [resolvable:$true] %s28
      %34 = dma.hbm_to_vmem [thread:$0]  %s1, 1024, %s29, [#allocation7], 64, 64, 4
    $region9: #{tpu_custom_call.1} parent=1 // pred_fallthru
      _
    // Predicated region
    $region10: #{tpu_custom_call.1} parent=1 // pred_check
      _
    $region11: #{tpu_custom_call.1} parent=1 // pred_check_branch
      %36 = sbr.rel (0) target = $region13
    $region12: #{tpu_custom_call.1} parent=1 // pred_region
      _
    $region13: #{tpu_custom_call.1} parent=1 // pred_fallthru
      _
    // Predicated region
    $region14: #{tpu_custom_call.1} parent=1 // pred_check
      _
    $region15: #{tpu_custom_call.1} parent=1 // pred_check_branch
      %38 = sbr.rel (0) target = $region17
    $region16: #{tpu_custom_call.1} parent=1 // pred_region
      %39 = dma.done [#allocation4], 1024
    $region17: #{tpu_custom_call.1} parent=1 // pred_fallthru
      _
    // Predicated region
    $region18: #{tpu_custom_call.1} parent=1 // pred_check
      _
    $region19: #{tpu_custom_call.1} parent=1 // pred_check_branch
      %41 = sbr.rel (0) target = $region21
    $region20: #{tpu_custom_call.1} parent=1 // pred_region
      %42 = dma.done [#allocation7], 1024
    $region21: #{tpu_custom_call.1} parent=1 // pred_fallthru
      _
    %p44 = scmp.eq.s32.totalorder 0, 0
    // Predicated region
    $region22: #{tpu_custom_call.1} parent=1 // pred_check
      %p45 = pneg %p44
    $region23: #{tpu_custom_call.1} parent=1 // pred_check_branch
      %47 = sbr.rel (%p45) target = $region25
    $region24: #{tpu_custom_call.1} parent=1 // pred_region
      %48 = vst [vmem:[#allocation2] sm:$0xff] 0.0
      %49 = vst [vmem:[#allocation2 + $0x8] sm:$0xff] 0.0
      %50 = vst [vmem:[#allocation2 + $0x10] sm:$0xff] 0.0
      %51 = vst [vmem:[#allocation2 + $0x18] sm:$0xff] 0.0
      %52 = vst [vmem:[#allocation2 + $0x20] sm:$0xff] 0.0
      %53 = vst [vmem:[#allocation2 + $0x28] sm:$0xff] 0.0
      %54 = vst [vmem:[#allocation2 + $0x30] sm:$0xff] 0.0
      %55 = vst [vmem:[#allocation2 + $0x38] sm:$0xff] 0.0
      %56 = vst [vmem:[#allocation2 + $0x40] sm:$0xff] 0.0
      %57 = vst [vmem:[#allocation2 + $0x48] sm:$0xff] 0.0
      %58 = vst [vmem:[#allocation2 + $0x50] sm:$0xff] 0.0
      %59 = vst [vmem:[#allocation2 + $0x58] sm:$0xff] 0.0
      %60 = vst [vmem:[#allocation2 + $0x60] sm:$0xff] 0.0
      %61 = vst [vmem:[#allocation2 + $0x68] sm:$0xff] 0.0
      %62 = vst [vmem:[#allocation2 + $0x70] sm:$0xff] 0.0
      %63 = vst [vmem:[#allocation2 + $0x78] sm:$0xff] 0.0
    $region25: #{tpu_custom_call.1} parent=1 // pred_fallthru
      _
    %v64 = vld [vmem:[#allocation2] sm:$0xff]
    %v65 = vld [vmem:[#allocation2 + $0x8] sm:$0xff]
    %v66 = vld [vmem:[#allocation2 + $0x10] sm:$0xff]
    %v67 = vld [vmem:[#allocation2 + $0x18] sm:$0xff]
    %v68 = vld [vmem:[#allocation2 + $0x20] sm:$0xff]
    %v69 = vld [vmem:[#allocation2 + $0x28] sm:$0xff]
    %v70 = vld [vmem:[#allocation2 + $0x30] sm:$0xff]
    %v71 = vld [vmem:[#allocation2 + $0x38] sm:$0xff]
    %v72 = vld [vmem:[#allocation2 + $0x40] sm:$0xff]
    %v73 = vld [vmem:[#allocation2 + $0x48] sm:$0xff]
    %v74 = vld [vmem:[#allocation2 + $0x50] sm:$0xff]
    %v75 = vld [vmem:[#allocation2 + $0x58] sm:$0xff]
    %v76 = vld [vmem:[#allocation2 + $0x60] sm:$0xff]
    %v77 = vld [vmem:[#allocation2 + $0x68] sm:$0xff]
    %v78 = vld [vmem:[#allocation2 + $0x70] sm:$0xff]
    %v79 = vld [vmem:[#allocation2 + $0x78] sm:$0xff]
    %v80 = vld [vmem:[#allocation3] sm:$0xf]
    %v81 = vld [vmem:[#allocation3 + $0x4] sm:$0xf]
    %v82 = vld [vmem:[#allocation3 + $0x8] sm:$0xf]
    %v83 = vld [vmem:[#allocation3 + $0xc] sm:$0xf]
    %v84 = vld [vmem:[#allocation3 + $0x10] sm:$0xf]
    %v85 = vld [vmem:[#allocation3 + $0x14] sm:$0xf]
    %v86 = vld [vmem:[#allocation3 + $0x18] sm:$0xf]
    %v87 = vld [vmem:[#allocation3 + $0x1c] sm:$0xf]
    %v88 = vld [vmem:[#allocation3 + $0x20] sm:$0xf]
    %v89 = vld [vmem:[#allocation3 + $0x24] sm:$0xf]
    %v90 = vld [vmem:[#allocation3 + $0x28] sm:$0xf]
    %v91 = vld [vmem:[#allocation3 + $0x2c] sm:$0xf]
    %v92 = vld [vmem:[#allocation3 + $0x30] sm:$0xf]
    %v93 = vld [vmem:[#allocation3 + $0x34] sm:$0xf]
    %v94 = vld [vmem:[#allocation3 + $0x38] sm:$0xf]
    %v95 = vld [vmem:[#allocation3 + $0x3c] sm:$0xf]
    %v96 = vld [vmem:[#allocation6] sm:$0xf]
    %v97 = vld [vmem:[#allocation6 + $0x4] sm:$0xf]
    %v98 = vld [vmem:[#allocation6 + $0x8] sm:$0xf]
    %v99 = vld [vmem:[#allocation6 + $0xc] sm:$0xf]
    %v100 = vld [vmem:[#allocation6 + $0x10] sm:$0xf]
    %v101 = vld [vmem:[#allocation6 + $0x14] sm:$0xf]
    %v102 = vld [vmem:[#allocation6 + $0x18] sm:$0xf]
    %v103 = vld [vmem:[#allocation6 + $0x1c] sm:$0xf]
    %v104 = vld [vmem:[#allocation6 + $0x20] sm:$0xf]
    %v105 = vld [vmem:[#allocation6 + $0x24] sm:$0xf]
    %v106 = vld [vmem:[#allocation6 + $0x28] sm:$0xf]
    %v107 = vld [vmem:[#allocation6 + $0x2c] sm:$0xf]
    %v108 = vld [vmem:[#allocation6 + $0x30] sm:$0xf]
    %v109 = vld [vmem:[#allocation6 + $0x34] sm:$0xf]
    %v110 = vld [vmem:[#allocation6 + $0x38] sm:$0xf]
    %v111 = vld [vmem:[#allocation6 + $0x3c] sm:$0xf]
    %v128 = vunpack.c.l.b16 %v80
    %v129 = vunpack.c.l.b16 %v81
    %v130 = vunpack.c.l.b16 %v82
    %v131 = vunpack.c.l.b16 %v83
    %v132 = vunpack.c.l.b16 %v84
    %v133 = vunpack.c.l.b16 %v85
    %v134 = vunpack.c.l.b16 %v86
    %v135 = vunpack.c.l.b16 %v87
    %v136 = vunpack.c.l.b16 %v88
    %v137 = vunpack.c.l.b16 %v89
    %v138 = vunpack.c.l.b16 %v90
    %v139 = vunpack.c.l.b16 %v91
    %v140 = vunpack.c.l.b16 %v92
    %v141 = vunpack.c.l.b16 %v93
    %v142 = vunpack.c.l.b16 %v94
    %v143 = vunpack.c.l.b16 %v95
    %v144 = vpack.c.b16 %v129, %v128
    %v145 = vpack.c.b16 %v131, %v130
    %v146 = vpack.c.b16 %v133, %v132
    %v147 = vpack.c.b16 %v135, %v134
    %v148 = vpack.c.b16 %v137, %v136
    %v149 = vpack.c.b16 %v139, %v138
    %v150 = vpack.c.b16 %v141, %v140
    %v151 = vpack.c.b16 %v143, %v142
    %v176 = vunpack.c.l.b16 %v96
    %v177 = vunpack.c.l.b16 %v97
    %v178 = vunpack.c.l.b16 %v98
    %v179 = vunpack.c.l.b16 %v99
    %v180 = vunpack.c.l.b16 %v100
    %v181 = vunpack.c.l.b16 %v101
    %v182 = vunpack.c.l.b16 %v102
    %v183 = vunpack.c.l.b16 %v103
    %v184 = vunpack.c.l.b16 %v104
    %v185 = vunpack.c.l.b16 %v105
    %v186 = vunpack.c.l.b16 %v106
    %v187 = vunpack.c.l.b16 %v107
    %v188 = vunpack.c.l.b16 %v108
    %v189 = vunpack.c.l.b16 %v109
    %v190 = vunpack.c.l.b16 %v110
    %v191 = vunpack.c.l.b16 %v111
    %v192 = vpack.c.b16 %v177, %v176
    %v193 = vpack.c.b16 %v179, %v178
    %v194 = vpack.c.b16 %v181, %v180
    %v195 = vpack.c.b16 %v183, %v182
    %v196 = vpack.c.b16 %v185, %v184
    %v197 = vpack.c.b16 %v187, %v186
    %v198 = vpack.c.b16 %v189, %v188
    %v199 = vpack.c.b16 %v191, %v190
    %208 = vmatprep.subr.bf16.mxu0 0
    %209 = vmatpush1.bf16.msra.mxu0 %v192
    %210 = vmatprep.subr.bf16.mxu0 0
    %211 = vmatpush1.bf16.msra.mxu0 %v193
    %212 = vmatprep.subr.bf16.mxu0 0
    %213 = vmatpush1.bf16.msra.mxu0 %v194
    %214 = vmatprep.subr.bf16.mxu0 0
    %215 = vmatpush1.bf16.msra.mxu0 %v195
    %216 = vmatprep.subr.bf16.mxu0 0
    %217 = vmatpush1.bf16.msra.mxu0 %v196
    %218 = vmatprep.subr.bf16.mxu0 0
    %219 = vmatpush1.bf16.msra.mxu0 %v197
    %220 = vmatprep.subr.bf16.mxu0 0
    %221 = vmatpush1.bf16.msra.mxu0 %v198
    %222 = vmatprep.subr.bf16.mxu0 0
    %223 = vmatpush1.bf16.msra.mxu0 %v199
    %224 = vmatprep.subr.bf16.mxu0 0
    %225 = vmatpush1.bf16.msra.mxu0 0
    %226 = vmatprep.subr.bf16.mxu0 0
    %227 = vmatpush1.bf16.msra.mxu0 0
    %228 = vmatprep.subr.bf16.mxu0 0
    %229 = vmatpush1.bf16.msra.mxu0 0
    %230 = vmatprep.subr.bf16.mxu0 0
    %231 = vmatpush1.bf16.msra.mxu0 0
    %232 = vmatprep.subr.bf16.mxu0 0
    %233 = vmatpush1.bf16.msra.mxu0 0
    %234 = vmatprep.subr.bf16.mxu0 0
    %235 = vmatpush1.bf16.msra.mxu0 0
    %236 = vmatprep.subr.bf16.mxu0 0
    %237 = vmatpush1.bf16.msra.mxu0 0
    %238 = vmatprep.subr.bf16.mxu0 0
    %239 = vmatpush1.bf16.msra.mxu0 0
    %240 = vmatprep.mubr.bf16.mxu0 0
    %241 = vmatmul.mubr.bf16.gmra.mrb[0].mxu0 %v144
    %v242 = vpop.f32.mrb[0].mxu0
    %v243 = vadd.f32 0.0, %v242
    %v244 = vpop.f32.mrb[0].mxu0
    %v245 = vpop.f32.mrb[0].mxu0
    %v246 = vadd.f32 0.0, %v245
    %v247 = vpop.f32.mrb[0].mxu0
    %248 = vmatprep.mubr.bf16.mxu0 0
    %249 = vmatmul.mubr.bf16.gmra.mrb[0].mxu0 %v145
    %v250 = vpop.f32.mrb[0].mxu0
    %v251 = vadd.f32 0.0, %v250
    %v252 = vpop.f32.mrb[0].mxu0
    %v253 = vpop.f32.mrb[0].mxu0
    %v254 = vadd.f32 0.0, %v253
    %v255 = vpop.f32.mrb[0].mxu0
    %256 = vmatprep.mubr.bf16.mxu0 0
    %257 = vmatmul.mubr.bf16.gmra.mrb[0].mxu0 %v146
    %v258 = vpop.f32.mrb[0].mxu0
    %v259 = vadd.f32 0.0, %v258
    %v260 = vpop.f32.mrb[0].mxu0
    %v261 = vpop.f32.mrb[0].mxu0
    %v262 = vadd.f32 0.0, %v261
    %v263 = vpop.f32.mrb[0].mxu0
    %264 = vmatprep.mubr.bf16.mxu0 0
    %265 = vmatmul.mubr.bf16.gmra.mrb[0].mxu0 %v147
    %v266 = vpop.f32.mrb[0].mxu0
    %v267 = vadd.f32 0.0, %v266
    %v268 = vpop.f32.mrb[0].mxu0
    %v269 = vpop.f32.mrb[0].mxu0
    %v270 = vadd.f32 0.0, %v269
    %v271 = vpop.f32.mrb[0].mxu0
    %272 = vmatprep.mubr.bf16.mxu0 0
    %273 = vmatmul.mubr.bf16.gmra.mrb[0].mxu0 %v148
    %v274 = vpop.f32.mrb[0].mxu0
    %v275 = vadd.f32 0.0, %v274
    %v276 = vpop.f32.mrb[0].mxu0
    %v277 = vpop.f32.mrb[0].mxu0
    %v278 = vadd.f32 0.0, %v277
    %v279 = vpop.f32.mrb[0].mxu0
    %280 = vmatprep.mubr.bf16.mxu0 0
    %281 = vmatmul.mubr.bf16.gmra.mrb[0].mxu0 %v149
    %v282 = vpop.f32.mrb[0].mxu0
    %v283 = vadd.f32 0.0, %v282
    %v284 = vpop.f32.mrb[0].mxu0
    %v285 = vpop.f32.mrb[0].mxu0
    %v286 = vadd.f32 0.0, %v285
    %v287 = vpop.f32.mrb[0].mxu0
    %288 = vmatprep.mubr.bf16.mxu0 0
    %289 = vmatmul.mubr.bf16.gmra.mrb[0].mxu0 %v150
    %v290 = vpop.f32.mrb[0].mxu0
    %v291 = vadd.f32 0.0, %v290
    %v292 = vpop.f32.mrb[0].mxu0
    %v293 = vpop.f32.mrb[0].mxu0
    %v294 = vadd.f32 0.0, %v293
    %v295 = vpop.f32.mrb[0].mxu0
    %296 = vmatprep.mubr.bf16.mxu0 0
    %297 = vmatmul.mubr.bf16.gmra.mrb[0].mxu0 %v151
    %v298 = vpop.f32.mrb[0].mxu0
    %v299 = vadd.f32 0.0, %v298
    %v300 = vpop.f32.mrb[0].mxu0
    %v301 = vpop.f32.mrb[0].mxu0
    %v302 = vadd.f32 0.0, %v301
    %v303 = vpop.f32.mrb[0].mxu0
    %304 = vdwg.mxu0
    %v305 = vadd.f32 %v64, %v243
    %v306 = vadd.f32 %v65, %v246
    %v307 = vadd.f32 %v66, %v251
    %v308 = vadd.f32 %v67, %v254
    %v309 = vadd.f32 %v68, %v259
    %v310 = vadd.f32 %v69, %v262
    %v311 = vadd.f32 %v70, %v267
    %v312 = vadd.f32 %v71, %v270
    %v313 = vadd.f32 %v72, %v275
    %v314 = vadd.f32 %v73, %v278
    %v315 = vadd.f32 %v74, %v283
    %v316 = vadd.f32 %v75, %v286
    %v317 = vadd.f32 %v76, %v291
    %v318 = vadd.f32 %v77, %v294
    %v319 = vadd.f32 %v78, %v299
    %v320 = vadd.f32 %v79, %v302
    %321 = vst [vmem:[#allocation2] sm:$0xff] %v305
    %322 = vst [vmem:[#allocation2 + $0x8] sm:$0xff] %v306
    %323 = vst [vmem:[#allocation2 + $0x10] sm:$0xff] %v307
    %324 = vst [vmem:[#allocation2 + $0x18] sm:$0xff] %v308
    %325 = vst [vmem:[#allocation2 + $0x20] sm:$0xff] %v309
    %326 = vst [vmem:[#allocation2 + $0x28] sm:$0xff] %v310
    %327 = vst [vmem:[#allocation2 + $0x30] sm:$0xff] %v311
    %328 = vst [vmem:[#allocation2 + $0x38] sm:$0xff] %v312
    %329 = vst [vmem:[#allocation2 + $0x40] sm:$0xff] %v313
    %330 = vst [vmem:[#allocation2 + $0x48] sm:$0xff] %v314
    %331 = vst [vmem:[#allocation2 + $0x50] sm:$0xff] %v315
    %332 = vst [vmem:[#allocation2 + $0x58] sm:$0xff] %v316
    %333 = vst [vmem:[#allocation2 + $0x60] sm:$0xff] %v317
    %334 = vst [vmem:[#allocation2 + $0x68] sm:$0xff] %v318
    %335 = vst [vmem:[#allocation2 + $0x70] sm:$0xff] %v319
    %336 = vst [vmem:[#allocation2 + $0x78] sm:$0xff] %v320
    // Predicated region
    $region26: #{tpu_custom_call.1} parent=1 // pred_check
      %p337 = pneg %p44
    $region27: #{tpu_custom_call.1} parent=1 // pred_check_branch
      %339 = sbr.rel (%p337) target = $region29
    $region28: #{tpu_custom_call.1} parent=1 // pred_region
      %v340 = vld [vmem:[#allocation2] sm:$0xff]
      %v341 = vld [vmem:[#allocation2 + $0x8] sm:$0xff]
      %v342 = vld [vmem:[#allocation2 + $0x10] sm:$0xff]
      %v343 = vld [vmem:[#allocation2 + $0x18] sm:$0xff]
      %v344 = vld [vmem:[#allocation2 + $0x20] sm:$0xff]
      %v345 = vld [vmem:[#allocation2 + $0x28] sm:$0xff]
      %v346 = vld [vmem:[#allocation2 + $0x30] sm:$0xff]
      %v347 = vld [vmem:[#allocation2 + $0x38] sm:$0xff]
      %v348 = vld [vmem:[#allocation2 + $0x40] sm:$0xff]
      %v349 = vld [vmem:[#allocation2 + $0x48] sm:$0xff]
      %v350 = vld [vmem:[#allocation2 + $0x50] sm:$0xff]
      %v351 = vld [vmem:[#allocation2 + $0x58] sm:$0xff]
      %v352 = vld [vmem:[#allocation2 + $0x60] sm:$0xff]
      %v353 = vld [vmem:[#allocation2 + $0x68] sm:$0xff]
      %v354 = vld [vmem:[#allocation2 + $0x70] sm:$0xff]
      %v355 = vld [vmem:[#allocation2 + $0x78] sm:$0xff]
      %v356 = vld [vmem:[%s2] sm:$0x1]
      %v358 = vlaneseq
      %v359 = vshrl.u32 %v358, 7
      %v360 = vsub.s32 0, %v359
      %v361 = vrot.slane %v356, %v360
      %v363 = vadd.f32 %v340, %v361
      %v364 = vadd.f32 %v341, %v361
      %v365 = vadd.f32 %v342, %v361
      %v366 = vadd.f32 %v343, %v361
      %v367 = vadd.f32 %v344, %v361
      %v368 = vadd.f32 %v345, %v361
      %v369 = vadd.f32 %v346, %v361
      %v370 = vadd.f32 %v347, %v361
      %v371 = vadd.f32 %v348, %v361
      %v372 = vadd.f32 %v349, %v361
      %v373 = vadd.f32 %v350, %v361
      %v374 = vadd.f32 %v351, %v361
      %v375 = vadd.f32 %v352, %v361
      %v376 = vadd.f32 %v353, %v361
      %v377 = vadd.f32 %v354, %v361
      %v378 = vadd.f32 %v355, %v361
      %v379 = vmax.f32 %v363, 0.0
      %v380 = vmax.f32 %v364, 0.0
      %v381 = vmax.f32 %v365, 0.0
      %v382 = vmax.f32 %v366, 0.0
      %v383 = vmax.f32 %v367, 0.0
      %v384 = vmax.f32 %v368, 0.0
      %v385 = vmax.f32 %v369, 0.0
      %v386 = vmax.f32 %v370, 0.0
      %v387 = vmax.f32 %v371, 0.0
      %v388 = vmax.f32 %v372, 0.0
      %v389 = vmax.f32 %v373, 0.0
      %v390 = vmax.f32 %v374, 0.0
      %v391 = vmax.f32 %v375, 0.0
      %v392 = vmax.f32 %v376, 0.0
      %v393 = vmax.f32 %v377, 0.0
      %v394 = vmax.f32 %v378, 0.0
      %395 = vst [vmem:[#allocation8] sm:$0xff] %v379
      %396 = vst [vmem:[#allocation8 + $0x8] sm:$0xff] %v380
      %397 = vst [vmem:[#allocation8 + $0x10] sm:$0xff] %v381
      %398 = vst [vmem:[#allocation8 + $0x18] sm:$0xff] %v382
      %399 = vst [vmem:[#allocation8 + $0x20] sm:$0xff] %v383
      %400 = vst [vmem:[#allocation8 + $0x28] sm:$0xff] %v384
      %401 = vst [vmem:[#allocation8 + $0x30] sm:$0xff] %v385
      %402 = vst [vmem:[#allocation8 + $0x38] sm:$0xff] %v386
      %403 = vst [vmem:[#allocation8 + $0x40] sm:$0xff] %v387
      %404 = vst [vmem:[#allocation8 + $0x48] sm:$0xff] %v388
      %405 = vst [vmem:[#allocation8 + $0x50] sm:$0xff] %v389
      %406 = vst [vmem:[#allocation8 + $0x58] sm:$0xff] %v390
      %407 = vst [vmem:[#allocation8 + $0x60] sm:$0xff] %v391
      %408 = vst [vmem:[#allocation8 + $0x68] sm:$0xff] %v392
      %409 = vst [vmem:[#allocation8 + $0x70] sm:$0xff] %v393
      %410 = vst [vmem:[#allocation8 + $0x78] sm:$0xff] %v394
    $region29: #{tpu_custom_call.1} parent=1 // pred_fallthru
      _
    // Predicated region
    $region30: #{tpu_custom_call.1} parent=1 // pred_check
      _
    $region31: #{tpu_custom_call.1} parent=1 // pred_check_branch
      %412 = sbr.rel (0) target = $region33
    $region32: #{tpu_custom_call.1} parent=1 // pred_region
      %s414 = ssub.s32 2048, 2048
      %415 = vsyncadd [#allocation5], %s414
      %s416 = sshll.u32 [#allocation8], 4
      %s417 = int_to_ptr.vmem [resolvable:$true] %s416
      %422 = dma.vmem_to_hbm [thread:$0]  %s417, 2048, %s3, [#allocation5], 128, 128, 8
    $region33: #{tpu_custom_call.1} parent=1 // pred_fallthru
      _
    // Predicated region
    $region34: #{tpu_custom_call.1} parent=1 // pred_check
      _
    $region35: #{tpu_custom_call.1} parent=1 // pred_check_branch
      %424 = sbr.rel (0) target = $region37
    $region36: #{tpu_custom_call.1} parent=1 // pred_region
      %425 = dma.done [#allocation5], 2048
    $region37: #{tpu_custom_call.1} parent=1 // pred_fallthru
      _
    %426 = vsyncpa [#allocation4], 1
    %427 = vsyncpa [#allocation7], 1
    %428 = vsyncpa [#allocation5], 1

</llo_original>
